<compile_context>
chip_gen: v5e
topology: v5e:2x2
jax: 0.10.0
libtpu: 0.0.40
codegen_flags: <defaults>
</compile_context>

<pallas_src>
import functools

import jax
import jax.numpy as jnp
from jax import lax
from jax.experimental import pallas as pl
from jax.experimental.pallas import tpu as pltpu


def exu_kernel(x_ref, ew_ref, bvec_ref, o_ref):
    # x_ref:    (TM, I)  bf16  current batch tile (resident across the inner out-tile sweep)
    # ew_ref:   (I, TN)  bf16  exp(weight) tile (precomputed in the wrapper)
    # bvec_ref: (1, TN)  f32   bias @ exp(weight) tile (folded bias)
    # o_ref:    (TM, TN) f32
    acc = jnp.dot(x_ref[...], ew_ref[...], preferred_element_type=jnp.float32)  # MXU
    o_ref[...] = jnp.clip(acc - bvec_ref[...], 0.0, 1.0).astype(o_ref.dtype)    # VPU


def _round_up(a: int, b: int) -> int:
    return (a + b - 1) // b * b


@functools.partial(jax.jit, static_argnames=("tm", "tn"))
def exu_forward(x, weight, bias, *, tm: int = 1024, tn: int = 256):
    B, I = x.shape
    I2, O = weight.shape
    assert I == I2 and bias.shape == (I,)

    # exp(weight) + folded bias are tiny (I x O): compute once outside the kernel.
    ew_f32 = jnp.exp(weight)
    bvec = jnp.dot(bias.reshape(1, I), ew_f32,
                   precision=lax.Precision.HIGHEST)          # (1, O) f32
    ew = ew_f32.astype(jnp.bfloat16)
    x_bf = x.astype(jnp.bfloat16)

    # Lane-dense output tile width (multiple of 128), no wider than needed.
    # TODO(synk): generation-aware tiling (tn=128 on v5e, size against 64 MiB VMEM on v7x)
    # via pltpu.get_tpu_info().
    tn_eff = min(_round_up(max(tn, 128), 128), _round_up(O, 128))

    # Batch tile: multiple of 8 sublanes, shrunk if the double-buffered working set
    # would not fit comfortably in VMEM (guards wide in_features).
    def _block_bytes(t):
        return 2 * (t * I * 2 + I * tn_eff * 2 + tn_eff * 4 + t * tn_eff * 4)

    tm_eff = min(_round_up(max(tm, 8), 8), _round_up(B, 8))
    budget = 40 * 1024 * 1024
    while tm_eff > 8 and _block_bytes(tm_eff) > budget:
        tm_eff = max(8, _round_up(tm_eff // 2, 8))
    # TODO(synk): add a K grid axis + f32 accumulator (init/finalize via pl.when) if
    # in_features alone overflows VMEM even at tm=8.

    b_pad = _round_up(B, tm_eff)
    o_pad = _round_up(O, tn_eff)
    if b_pad != B:
        x_bf = jnp.pad(x_bf, ((0, b_pad - B), (0, 0)))
    if o_pad != O:
        ew = jnp.pad(ew, ((0, 0), (0, o_pad - O)))     # zero cols -> padded outputs are 0
        bvec = jnp.pad(bvec, ((0, 0), (0, o_pad - O)))

    n_bt = b_pad // tm_eff
    n_ot = o_pad // tn_eff
    # Batch outer, out inner: x's block index is constant over the inner sweep, so
    # the x tile is fetched from HBM exactly once per batch tile.
    grid = (n_bt, n_ot)

    vmem_limit = int(min(max(2 * _block_bytes(tm_eff), 16 * 1024 * 1024),
                         48 * 1024 * 1024))

    out = pl.pallas_call(
        exu_kernel,
        out_shape=jax.ShapeDtypeStruct((b_pad, o_pad), x.dtype),
        grid_spec=pltpu.PrefetchScalarGridSpec(
            num_scalar_prefetch=0,
            grid=grid,
            in_specs=[
                pl.BlockSpec((tm_eff, I), lambda i, j: (i, 0)),   # x (bf16), once per batch tile
                pl.BlockSpec((I, tn_eff), lambda i, j: (0, j)),   # exp(weight) (bf16)
                pl.BlockSpec((1, tn_eff), lambda i, j: (0, j)),   # bias @ exp(weight) (f32)
            ],
            out_specs=pl.BlockSpec((tm_eff, tn_eff), lambda i, j: (i, j)),
        ),
        compiler_params=pltpu.CompilerParams(
            # No scratch carried across steps -> both axes parallel (v7x megacore).
            dimension_semantics=("parallel", "parallel"),
            vmem_limit_bytes=vmem_limit,
        ),
        cost_estimate=pl.CostEstimate(
            flops=2 * b_pad * I * o_pad,
            transcendentals=0,                                  # exp() moved to the wrapper
            bytes_accessed=(2 * b_pad * I                       # x (bf16), once per batch tile
                            + n_bt * (2 * I * o_pad + 4 * o_pad)  # ew + bvec re-reads
                            + 4 * b_pad * o_pad),               # out (f32)
        ),
    )(x_bf, ew, bvec)

    return out[:B, :O]


def truncated_normal(key, shape, mean=0.0, std=1.0, dtype=jnp.float32):
    # Stand-in for torch truncated_normal_ (truncate to (-2, 2), scale, shift).
    t = jax.random.truncated_normal(key, -2.0, 2.0, shape, dtype)
    return t * std + mean


def _reference(x, weight, bias):
    # Matches the kernel's numerics: bf16 MXU operands, f32 accumulate, folded bias.
    ew_f32 = jnp.exp(weight)
    bvec = jnp.dot(bias.reshape(1, -1), ew_f32, precision=lax.Precision.HIGHEST)
    acc = jnp.dot(x.astype(jnp.bfloat16), ew_f32.astype(jnp.bfloat16),
                  preferred_element_type=jnp.float32)
    return jnp.clip(acc - bvec, 0.0, 1.0)


if __name__ == "__main__":
    key = jax.random.PRNGKey(0)

    # --- Test 1: NAM-typical shapes (single grid step) -------------------
    in_features, out_features, batch = 32, 64, 8
    kx, kw, kb, key = jax.random.split(key, 4)
    x = jax.random.normal(kx, (batch, in_features), dtype=jnp.float32)
    weight = truncated_normal(kw, (in_features, out_features), mean=4.0, std=0.5)
    bias = truncated_normal(kb, (in_features,), mean=0.0, std=0.5)

    out = jax.block_until_ready(exu_forward(x, weight, bias))
    ref = _reference(x, weight, bias)
    assert out.shape == (batch, out_features)
    assert jnp.allclose(out, ref, atol=2e-2, rtol=2e-2)

    # --- Test 2: multi-tile grid on both axes + batch/out padding --------
    in_features, out_features, batch = 16, 320, 37
    kx, kw, kb, key = jax.random.split(key, 4)
    x2 = jax.random.normal(kx, (batch, in_features), dtype=jnp.float32)
    weight2 = truncated_normal(kw, (in_features, out_features), mean=4.0, std=0.5)
    bias2 = truncated_normal(kb, (in_features,), mean=0.0, std=0.5)

    out2 = jax.block_until_ready(exu_forward(x2, weight2, bias2, tm=8, tn=128))
    ref2 = _reference(x2, weight2, bias2)
    assert out2.shape == (batch, out_features)
    assert jnp.allclose(out2, ref2, atol=2e-2, rtol=2e-2)

    print("KERNEL_OK")
</pallas_src>

<mosaic_0001>
module attributes {stable_mosaic.version = 11 : i64} {
  func.func @exu_kernel(%arg0: i32, %arg1: i32, %arg2: memref<8x32xbf16, #tpu.memory_space<vmem>>, %arg3: memref<32x128xbf16, #tpu.memory_space<vmem>>, %arg4: memref<1x128xf32, #tpu.memory_space<vmem>>, %arg5: memref<8x128xf32, #tpu.memory_space<vmem>>) attributes {dimension_semantics = [#tpu.dimension_semantics<parallel>, #tpu.dimension_semantics<parallel>], iteration_bounds = array<i64: 1, 1>, scalar_prefetch = 0 : i64, scratch_operands = 0 : i64, tpu.core_type = #tpu.core_type<tc>, window_params = [{transform_indices = @transform_0, window_bounds = array<i64: 8, 32>}, {transform_indices = @transform_1, window_bounds = array<i64: 32, 128>}, {transform_indices = @transform_2, window_bounds = array<i64: 1, 128>}, {transform_indices = @transform_3, window_bounds = array<i64: 8, 128>}]} {
    %c0 = arith.constant 0 : index
    %c0_0 = arith.constant 0 : index
    %0 = vector.load %arg2[%c0, %c0_0] : memref<8x32xbf16, #tpu.memory_space<vmem>>, vector<8x32xbf16>
    %c0_1 = arith.constant 0 : index
    %c0_2 = arith.constant 0 : index
    %1 = vector.load %arg3[%c0_1, %c0_2] : memref<32x128xbf16, #tpu.memory_space<vmem>>, vector<32x128xbf16>
    %cst = arith.constant dense<0.000000e+00> : vector<8x128xf32>
    %2 = tpu.matmul %0, %1, %cst {dimension_numbers = #tpu.dot_dimension_numbers<[1], [0], [0], [1], [0, 0, 1, 1], [], []>} : vector<8x32xbf16>, vector<32x128xbf16>, vector<8x128xf32> -> vector<8x128xf32>
    %c0_3 = arith.constant 0 : index
    %c0_4 = arith.constant 0 : index
    %3 = vector.load %arg4[%c0_3, %c0_4] : memref<1x128xf32, #tpu.memory_space<vmem>>, vector<1x128xf32>
    %4 = vector.broadcast %3 : vector<1x128xf32> to vector<8x128xf32>
    %5 = arith.subf %2, %4 : vector<8x128xf32>
    %cst_5 = arith.constant 0.000000e+00 : f32
    %cst_6 = arith.constant 1.000000e+00 : f32
    %6 = vector.broadcast %cst_5 : f32 to vector<8x128xf32>
    %7 = arith.maximumf %6, %5 : vector<8x128xf32>
    %8 = vector.broadcast %cst_6 : f32 to vector<8x128xf32>
    %9 = arith.minimumf %8, %7 : vector<8x128xf32>
    %c0_7 = arith.constant 0 : index
    %c0_8 = arith.constant 0 : index
    %10 = vector.load %arg5[%c0_7, %c0_8] : memref<8x128xf32, #tpu.memory_space<vmem>>, vector<8x128xf32>
    tpu.vector_store %arg5[%c0_7, %c0_8], %9 {strides = array<i32>} : memref<8x128xf32, #tpu.memory_space<vmem>>, vector<8x128xf32>,
    return
  }
  func.func @transform_0(%arg0: i32, %arg1: i32) -> (i32, i32) {
    %c0_i32 = arith.constant 0 : i32
    %c0_i32_0 = arith.constant 0 : i32
    return %arg0, %c0_i32 : i32, i32
  }
  func.func @transform_1(%arg0: i32, %arg1: i32) -> (i32, i32) {
    %c0_i32 = arith.constant 0 : i32
    %c0_i32_0 = arith.constant 0 : i32
    return %c0_i32, %arg1 : i32, i32
  }
  func.func @transform_2(%arg0: i32, %arg1: i32) -> (i32, i32) {
    %c0_i32 = arith.constant 0 : i32
    %c0_i32_0 = arith.constant 0 : i32
    return %c0_i32, %arg1 : i32, i32
  }
  func.func @transform_3(%arg0: i32, %arg1: i32) -> (i32, i32) {
    %c0_i32 = arith.constant 0 : i32
    return %arg0, %arg1 : i32, i32
  }
}

</mosaic_0001>

<llo_original>
// kernel: exu_forward.1
$region0: #{exu_forward.1}
  #allocation0 [shape = 'u32[]', space=smem, size = 0x4, offset = 0x4, fixed_abs, tag = 'smem constant byte address 0x4 - core index']
  #allocation1 [shape = 'u32[72,128]{1,0:T(1,128)}', space=vmem, size = 0x9000, scoped, tag = 'internal scratch']
  %s0 = inlined_call_operand.vmem [shape: bf16[8,32], index: 0, kind: input, shape index: {}]
  %s1 = inlined_call_operand.vmem [shape: bf16[32,128], index: 1, kind: input, shape index: {}]
  %s2 = inlined_call_operand.vmem [shape: f32[1,128], index: 2, kind: input, shape index: {}]
  %s3 = inlined_call_operand.hbm [shape: f32[8,128], index: 3, kind: output, shape index: {}]
  %s4 = sld [smem:[#allocation0]]
  $region22: #{exu_forward.1} parent=0
    _
  %s6 = ssub.s32 1, %s4
  %s7 = scalar_select 0, %s6, %s4
  $region1: #{exu_forward.1} parent=0
    #allocation2 [shape = 'u8[4096]{0}', space=vmem, size = 0x1000, scoped, tag = 'output window, operand 0, single buffered']
    #allocation3 [shape = 's32[1]{0}', space=sflag, size = 0x4, scoped, tag = 'scoped memory for exu_forward.1']
    %8 = vsyncpa [#allocation3], 0
    // Predicated region
    $region2: #{exu_forward.1} parent=1 // pred_check
      _
    $region3: #{exu_forward.1} parent=1 // pred_check_branch
      %10 = sbr.rel (0) target = $region5
    $region4: #{exu_forward.1} parent=1 // pred_region
      _
    $region5: #{exu_forward.1} parent=1 // pred_fallthru
      _
    // Predicated region
    $region6: #{exu_forward.1} parent=1 // pred_check
      _
    $region7: #{exu_forward.1} parent=1 // pred_check_branch
      %12 = sbr.rel (0) target = $region9
    $region8: #{exu_forward.1} parent=1 // pred_region
      _
    $region9: #{exu_forward.1} parent=1 // pred_fallthru
      _
    // Predicated region
    $region10: #{exu_forward.1} parent=1 // pred_check
      _
    $region11: #{exu_forward.1} parent=1 // pred_check_branch
      %14 = sbr.rel (0) target = $region13
    $region12: #{exu_forward.1} parent=1 // pred_region
      _
    $region13: #{exu_forward.1} parent=1 // pred_fallthru
      _
    %v16 = vld [vmem:[%s0] sm:$0xf]
    %v17 = vld [vmem:[%s1] sm:$0xf]
    %v18 = vld [vmem:[%s1 + $0x4] sm:$0xf]
    %v19 = vld [vmem:[%s1 + $0x8] sm:$0xf]
    %v20 = vld [vmem:[%s1 + $0xc] sm:$0xf]
    %v25 = vunpack.c.l.b16 %v17
    %v26 = vunpack.c.l.b16 %v18
    %v27 = vunpack.c.l.b16 %v19
    %v28 = vunpack.c.l.b16 %v20
    %v29 = vpack.c.b16 %v26, %v25
    %v30 = vpack.c.b16 %v28, %v27
    %vm33 = vcmask 261120
    %v35 = vsel %vm33, %v16, 0
    %37 = vmatpush.bf16.msra.mxu0 0
    %38 = vmatpush.bf16.msra.mxu0 0
    %39 = vmatpush.bf16.msra.mxu0 0
    %40 = vmatpush.bf16.msra.mxu0 0
    %41 = vmatpush.bf16.msra.mxu0 0
    %42 = vmatpush.bf16.msra.mxu0 0
    %43 = vmatpush.bf16.msra.mxu0 %v30
    %44 = vmatpush.bf16.msra.mxu0 %v29
    %45 = vmatmul.bf16.gmra.mxu0 %v35
    %v46 = vpop.f32.mrf.mxu0
    %v47 = vadd.f32 0.0, %v46
    %v48 = vpop.f32.mrf.mxu0
    %49 = vdwg.mxu0
    %v50 = vld [vmem:[%s2] sm:$0x1]
    %v52 = vperm.slane %v50, 0
    %v54 = vsub.f32 %v47, %v52
    %v55 = vmax.f32 %v54, 0.0
    %v56 = vmin.f32 %v55, 1.0
    %57 = vst [vmem:[#allocation2] sm:$0xff] %v56
    // Predicated region
    $region14: #{exu_forward.1} parent=1 // pred_check
      _
    $region15: #{exu_forward.1} parent=1 // pred_check_branch
      %59 = sbr.rel (0) target = $region17
    $region16: #{exu_forward.1} parent=1 // pred_region
      %61 = vsyncadd [#allocation3], 0
      %s63 = sshll.u32 [#allocation2], 4
      %s64 = int_to_ptr.vmem [resolvable:$true] %s63
      %s65 = sshll.u32 %s3, 4
      %s66 = int_to_ptr.hbm [resolvable:$true] %s65
      %68 = dma.vmem_to_hbm [thread:$0]  %s64, 128, %s66, [#allocation3]
    $region17: #{exu_forward.1} parent=1 // pred_fallthru
      _
    // Predicated region
    $region18: #{exu_forward.1} parent=1 // pred_check
      _
    $region19: #{exu_forward.1} parent=1 // pred_check_branch
      %70 = sbr.rel (0) target = $region21
    $region20: #{exu_forward.1} parent=1 // pred_region
      %72 = dma.done [#allocation3], 128
    $region21: #{exu_forward.1} parent=1 // pred_fallthru
      _
    %73 = vsyncpa [#allocation3], 1

</llo_original>
